<compile_context>
chip_gen: v5e
topology: v5e:2x2
jax: 0.10.0
libtpu: 0.0.40
codegen_flags: <defaults>
</compile_context>

<pallas_src>
import functools
from math import floor
from typing import NamedTuple

import jax
import jax.numpy as jnp
from jax import lax
from jax.experimental import pallas as pl
from jax.experimental.pallas import tpu as pltpu


# ------------------------------ configuration ------------------------------ #

class NetCfg(NamedTuple):
    C: int
    H: int
    W: int
    K1: int
    S1: int
    H1: int
    W1: int
    C1: int
    K2: int
    S2: int
    H2: int
    W2: int
    C2: int
    final_flat: int
    encoding: int
    output: int


def conv_output_shape(h_w, kernel_size=1, stride=1, pad=0, dilation=1):
    h = floor((h_w[0] + 2 * pad - dilation * (kernel_size - 1) - 1) / stride + 1)
    w = floor((h_w[1] + 2 * pad - dilation * (kernel_size - 1) - 1) / stride + 1)
    return (h, w)


def make_cfg(input_shape, encoding_size, output_size):
    C, H, W = input_shape
    H1, W1 = conv_output_shape((H, W), 8, 4)
    H2, W2 = conv_output_shape((H1, W1), 4, 2)
    return NetCfg(C=C, H=H, W=W,
                  K1=8, S1=4, H1=H1, W1=W1, C1=16,
                  K2=4, S2=2, H2=H2, W2=W2, C2=32,
                  final_flat=H2 * W2 * 32,
                  encoding=encoding_size, output=output_size)


# ----------------------------- fused Pallas kernel -------------------------- #

def make_fused_kernel(cfg: NetCfg, B: int):
    C1, C2 = cfg.C1, cfg.C2
    K2, S2 = cfg.K2, cfg.S2
    W1, H2, W2 = cfg.W1, cfg.H2, cfg.W2
    enc = cfg.encoding

    def kernel(p1_ref, w1_ref, b1_ref, w2_ref, b2_ref,
               wd1_ref, bd1_ref, wd2_ref, bd2_ref, mask_ref,
               action_ref,
               y1_ref):
        # ---- conv1 as a single GEMM (+bias, relu); bf16 operands, f32 acc ----
        # p1 rows are tap-major: row = (i1*W1 + j1)*B + b; columns (c, kh, kw).
        y1 = jnp.dot(p1_ref[...], w1_ref[...],
                     preferred_element_type=jnp.float32)
        y1_ref[...] = jnp.maximum(y1 + b1_ref[...], 0.0)      # (H1*W1*B, 16) f32

        # ---- conv2 + flatten + dense1 as shift-and-accumulate GEMMs ----
        # No im2col patch buffer, no flatten buffer: for each conv2 output
        # position (i2, j2), accumulate the K2*K2 receptive-field taps directly
        # on the MXU, then fold that (B, C2) block straight into dense1.
        # TODO(synk): use lax.fori_loop(unroll=True) here for configs where
        # H2*W2*K2*K2 is large (here it is 16 -> full static unroll is fine).
        hid_acc = jnp.zeros((B, enc), jnp.float32)
        for i2 in range(H2):
            for j2 in range(W2):
                acc = jnp.zeros((B, C2), jnp.float32)
                for kh in range(K2):
                    for kw in range(K2):
                        src = ((S2 * i2 + kh) * W1 + (S2 * j2 + kw)) * B
                        rows = y1_ref[pl.ds(src, B), :].astype(jnp.bfloat16)
                        tap = kh * K2 + kw
                        acc = acc + jnp.dot(
                            rows, w2_ref[pl.ds(tap * C1, C1), :],
                            preferred_element_type=jnp.float32)
                y2_pos = jnp.maximum(acc + b2_ref[...], 0.0)   # (B, C2) f32
                pos = i2 * W2 + j2
                hid_acc = hid_acc + jnp.dot(
                    y2_pos.astype(jnp.bfloat16),
                    wd1_ref[pl.ds(pos * C2, C2), :],
                    preferred_element_type=jnp.float32)
        hidden = jnp.maximum(hid_acc + bd1_ref[...], 0.0)      # (B, enc) f32

        # ---- dense2 + mask multiply + argmax: all f32 (faithful tie-break) ----
        q = jnp.dot(hidden, wd2_ref[...],
                    preferred_element_type=jnp.float32) + bd2_ref[...]
        q = q * mask_ref[...]                                  # (B, out)
        n_out = q.shape[1]
        col_ids = lax.broadcasted_iota(jnp.int32, q.shape, 1)
        maxv = jnp.max(q, axis=1, keepdims=True)
        idx = jnp.where(q == maxv, col_ids, n_out)
        action_ref[...] = jnp.min(idx, axis=1, keepdims=True).astype(jnp.int32)

    return kernel


def fused_forward(gp, p1, mask, cfg: NetCfg):
    """Single pallas_call running the whole qnet + head."""
    B = mask.shape[0]
    M1 = cfg.H1 * cfg.W1 * B
    vmem = pl.BlockSpec(memory_space=pltpu.MemorySpace.VMEM)
    return pl.pallas_call(
        make_fused_kernel(cfg, B),
        out_shape=jax.ShapeDtypeStruct((B, 1), jnp.int32),
        in_specs=[vmem] * 10,
        out_specs=vmem,
        scratch_shapes=[
            pltpu.VMEM((M1, cfg.C1), jnp.float32),   # y1: the only re-read tensor
        ],
        compiler_params=pltpu.CompilerParams(
            # Explicit VMEM budget (usage here is <1 MiB); safe on v5e/v6e/v7x.
            vmem_limit_bytes=16 * 1024 * 1024),
    )(p1, gp["w1"], gp["b1"], gp["w2"], gp["b2"],
      gp["wd1"], gp["bd1"], gp["wd2"], gp["bd2"], mask)


# ------------------------- parameters & one-time prep ----------------------- #

def init_params(key, cfg: NetCfg):
    """Raw parameters in PyTorch layout (Conv2d OIHW, Linear (out, in))."""
    ks = jax.random.split(key, 8)
    s = 0.05
    return {
        "w1": jax.random.normal(ks[0], (cfg.C1, cfg.C, cfg.K1, cfg.K1), jnp.float32) * s,
        "b1": jax.random.normal(ks[1], (cfg.C1,), jnp.float32) * s,
        "w2": jax.random.normal(ks[2], (cfg.C2, cfg.C1, cfg.K2, cfg.K2), jnp.float32) * s,
        "b2": jax.random.normal(ks[3], (cfg.C2,), jnp.float32) * s,
        "wd1": jax.random.normal(ks[4], (cfg.encoding, cfg.final_flat), jnp.float32) * s,
        "bd1": jax.random.normal(ks[5], (cfg.encoding,), jnp.float32) * s,
        "wd2": jax.random.normal(ks[6], (cfg.output, cfg.encoding), jnp.float32) * s,
        "bd2": jax.random.normal(ks[7], (cfg.output,), jnp.float32) * s,
    }


def prepare_gemm_params(params, cfg: NetCfg, mxu_dtype=jnp.bfloat16):
    """One-time weight layout + dtype prep (hoisted out of the per-call forward).

    MXU-facing weights (conv1 / conv2 / dense1) are stored in `mxu_dtype`
    (bf16); biases and the dense2 head stay f32.
    """
    C, C1, C2, enc = cfg.C, cfg.C1, cfg.C2, cfg.encoding
    K1, K2 = cfg.K1, cfg.K2

    # Patch-extraction kernel for conv1 im2col: grouped identity conv whose
    # output channel (c*K1*K1 + kh*K1 + kw) copies x[:, c] at offset (kh, kw)
    # -> feature order (c, kh, kw), identical to the PyTorch weight flatten.
    eye = jnp.eye(K1 * K1, dtype=mxu_dtype).reshape(K1 * K1, 1, K1, K1)
    p1_rhs = jnp.tile(eye, (C, 1, 1, 1))                              # (C*K1*K1, 1, K1, K1)

    return {
        "p1_rhs": p1_rhs,
        # conv1 GEMM weight: rows ordered (c_in, kh, kw).
        "w1": params["w1"].reshape(C1, -1).T.astype(mxu_dtype),       # (C*K1*K1, 16)
        "b1": params["b1"].reshape(1, C1),
        # conv2 GEMM weight: rows ordered (kh, kw, c_in); tap p uses rows
        # [p*C1, (p+1)*C1) -- matches the in-kernel tap accumulation.
        "w2": jnp.transpose(params["w2"], (2, 3, 1, 0)).reshape(-1, C2).astype(mxu_dtype),
        "b2": params["b2"].reshape(1, C2),
        # dense1 weight: rows reordered from PyTorch's (c, h2, w2) flatten to
        # (h2, w2, c) so that position (i2, j2) uses rows [pos*C2, (pos+1)*C2).
        "wd1": jnp.transpose(
            params["wd1"].reshape(enc, C2, cfg.H2, cfg.W2), (2, 3, 1, 0)
        ).reshape(cfg.final_flat, enc).astype(mxu_dtype),
        "bd1": params["bd1"].reshape(1, enc),
        # dense2 head stays f32 (feeds the argmax).
        "wd2": params["wd2"].T,                                       # (enc, out) f32
        "bd2": params["bd2"].reshape(1, cfg.output),
    }


# --------------------------------- forward ---------------------------------- #

@functools.partial(jax.jit, static_argnames=("cfg",))
def wrapper_net_forward(gemm_params, visual_obs, mask,
                        discrete_shape, version_number, memory_size, cfg: NetCfg):
    B = visual_obs.shape[0]
    mxu_dtype = gemm_params["w1"].dtype
    # conv1 im2col as ONE XLA op (grouped identity conv), in bf16, producing the
    # tap-major (H1, W1, B, C*K1*K1) layout directly via the "HWNC" output spec:
    # no NCHW->NHWC transpose, no extra transpose op, half the p1 HBM traffic.
    patches = lax.conv_general_dilated(
        visual_obs.astype(mxu_dtype), gemm_params["p1_rhs"],
        (cfg.S1, cfg.S1), "VALID",
        dimension_numbers=("NCHW", "OIHW", "HWNC"),
        feature_group_count=cfg.C)                                    # (H1, W1, B, C*K1*K1)
    p1 = patches.reshape(cfg.H1 * cfg.W1 * B, cfg.C * cfg.K1 * cfg.K1)

    action = fused_forward(gemm_params, p1, mask, cfg)
    return ([action], discrete_shape, version_number, memory_size)


# -------------------------------- reference --------------------------------- #

def reference_forward(params, visual_obs, mask, final_flat, mxu_dtype=jnp.bfloat16):
    """Pure-XLA reference with the PyTorch structure (NCHW convs, PyTorch weight
    layouts), evaluated with the SAME operand precision as the kernel
    (bf16 matmul operands, f32 accumulation, f32 biases/relu/dense2/argmax) so
    the argmax comparison is exact."""
    f32 = jnp.float32
    dn = ("NCHW", "OIHW", "NCHW")
    y1 = lax.conv_general_dilated(
        visual_obs.astype(mxu_dtype), params["w1"].astype(mxu_dtype),
        (4, 4), "VALID", dimension_numbers=dn, preferred_element_type=f32)
    y1 = jnp.maximum(y1 + params["b1"][None, :, None, None], 0.0)
    y2 = lax.conv_general_dilated(
        y1.astype(mxu_dtype), params["w2"].astype(mxu_dtype),
        (2, 2), "VALID", dimension_numbers=dn, preferred_element_type=f32)
    y2 = jnp.maximum(y2 + params["b2"][None, :, None, None], 0.0)
    h = y2.reshape(y2.shape[0], final_flat)
    h = jnp.dot(h.astype(mxu_dtype), params["wd1"].T.astype(mxu_dtype),
                preferred_element_type=f32) + params["bd1"]
    h = jnp.maximum(h, 0.0)
    q = jnp.dot(h, params["wd2"].T, preferred_element_type=f32) + params["bd2"]
    q = q * mask
    return jnp.argmax(q, axis=1, keepdims=True).astype(jnp.int32)


# ----------------------------------- main ------------------------------------ #

if __name__ == "__main__":
    key = jax.random.PRNGKey(0)
    k_in, k_mask, k_par = jax.random.split(key, 3)

    # small shapes: batch=2, channels=3, 20x20 image, encoding=32, 4 actions
    B, C, H, W = 2, 3, 20, 20
    encoding_size, output_size = 32, 4
    discrete_output_sizes = [output_size]

    cfg = make_cfg((C, H, W), encoding_size, output_size)

    visual_obs = jax.random.uniform(k_in, (B, C, H, W), jnp.float32)
    mask = jax.random.uniform(k_mask, (B, output_size), jnp.float32,
                              minval=0.5, maxval=1.5)

    params = init_params(k_par, cfg)
    gemm_params = prepare_gemm_params(params, cfg)   # one-time; bf16 MXU weights, f32 head

    # Barracuda wrapper constants (non-trainable Parameters in the module)
    version_number = jnp.array([3.0], jnp.float32)
    memory_size = jnp.array([0.0], jnp.float32)
    discrete_shape = jnp.array([discrete_output_sizes], jnp.float32)

    (actions, d_shape, ver, mem) = wrapper_net_forward(
        gemm_params, visual_obs, mask,
        discrete_shape, version_number, memory_size, cfg=cfg)
    action = jax.block_until_ready(actions[0])

    ref_action = jax.block_until_ready(
        reference_forward(params, visual_obs, mask, cfg.final_flat))

    assert action.shape == (B, 1)
    assert bool(jnp.all(action == ref_action)), (action, ref_action)
    assert bool(jnp.all(d_shape == jnp.array([[float(output_size)]])))
    assert float(ver[0]) == 3.0 and float(mem[0]) == 0.0

    print("KERNEL_OK")
</pallas_src>

<mosaic_0001>
module attributes {stable_mosaic.version = 11 : i64} {
  func.func @kernel(%arg0: memref<32x192xbf16, #tpu.memory_space<vmem>>, %arg1: memref<192x16xbf16, #tpu.memory_space<vmem>>, %arg2: memref<1x16xf32, #tpu.memory_space<vmem>>, %arg3: memref<256x32xbf16, #tpu.memory_space<vmem>>, %arg4: memref<1x32xf32, #tpu.memory_space<vmem>>, %arg5: memref<32x32xbf16, #tpu.memory_space<vmem>>, %arg6: memref<1x32xf32, #tpu.memory_space<vmem>>, %arg7: memref<32x4xf32, #tpu.memory_space<vmem>>, %arg8: memref<1x4xf32, #tpu.memory_space<vmem>>, %arg9: memref<2x4xf32, #tpu.memory_space<vmem>>, %arg10: memref<2x1xi32, #tpu.memory_space<vmem>>, %arg11: memref<32x16xf32, #tpu.memory_space<vmem>>) attributes {dimension_semantics = [], scalar_prefetch = 0 : i64, scratch_operands = 1 : i64, tpu.core_type = #tpu.core_type<tc>} {
    %c0 = arith.constant 0 : index
    %c0_0 = arith.constant 0 : index
    %0 = vector.load %arg0[%c0, %c0_0] : memref<32x192xbf16, #tpu.memory_space<vmem>>, vector<32x192xbf16>
    %c0_1 = arith.constant 0 : index
    %c0_2 = arith.constant 0 : index
    %1 = vector.load %arg1[%c0_1, %c0_2] : memref<192x16xbf16, #tpu.memory_space<vmem>>, vector<192x16xbf16>
    %cst = arith.constant dense<0.000000e+00> : vector<32x16xf32>
    %2 = tpu.matmul %0, %1, %cst {dimension_numbers = #tpu.dot_dimension_numbers<[1], [0], [0], [1], [0, 0, 1, 1], [], []>} : vector<32x192xbf16>, vector<192x16xbf16>, vector<32x16xf32> -> vector<32x16xf32>
    %c0_3 = arith.constant 0 : index
    %c0_4 = arith.constant 0 : index
    %3 = vector.load %arg2[%c0_3, %c0_4] : memref<1x16xf32, #tpu.memory_space<vmem>>, vector<1x16xf32>
    %4 = vector.broadcast %3 : vector<1x16xf32> to vector<32x16xf32>
    %5 = arith.addf %2, %4 : vector<32x16xf32>
    %cst_5 = arith.constant 0.000000e+00 : f32
    %6 = vector.broadcast %cst_5 : f32 to vector<32x16xf32>
    %7 = arith.maximumf %5, %6 : vector<32x16xf32>
    %c0_6 = arith.constant 0 : index
    %c0_7 = arith.constant 0 : index
    %8 = vector.load %arg11[%c0_6, %c0_7] : memref<32x16xf32, #tpu.memory_space<vmem>>, vector<32x16xf32>
    tpu.vector_store %arg11[%c0_6, %c0_7], %7 {strides = array<i32>} : memref<32x16xf32, #tpu.memory_space<vmem>>, vector<32x16xf32>,
    %cst_8 = arith.constant 0.000000e+00 : f32
    %9 = vector.broadcast %cst_8 : f32 to vector<2x32xf32>
    %cst_9 = arith.constant 0.000000e+00 : f32
    %10 = vector.broadcast %cst_9 : f32 to vector<2x32xf32>
    %c0_10 = arith.constant 0 : index
    %c0_11 = arith.constant 0 : index
    %11 = vector.load %arg11[%c0_10, %c0_11] : memref<32x16xf32, #tpu.memory_space<vmem>>, vector<2x16xf32>
    %12 = arith.truncf %11 : vector<2x16xf32> to vector<2x16xbf16>
    %c0_12 = arith.constant 0 : index
    %c0_13 = arith.constant 0 : index
    %13 = vector.load %arg3[%c0_12, %c0_13] : memref<256x32xbf16, #tpu.memory_space<vmem>>, vector<16x32xbf16>
    %cst_14 = arith.constant dense<0.000000e+00> : vector<2x32xf32>
    %14 = tpu.matmul %12, %13, %cst_14 {dimension_numbers = #tpu.dot_dimension_numbers<[1], [0], [0], [1], [0, 0, 1, 1], [], []>} : vector<2x16xbf16>, vector<16x32xbf16>, vector<2x32xf32> -> vector<2x32xf32>
    %15 = arith.addf %10, %14 : vector<2x32xf32>
    %c2 = arith.constant 2 : index
    %c0_15 = arith.constant 0 : index
    %16 = vector.load %arg11[%c2, %c0_15] : memref<32x16xf32, #tpu.memory_space<vmem>>, vector<2x16xf32>
    %17 = arith.truncf %16 : vector<2x16xf32> to vector<2x16xbf16>
    %c16 = arith.constant 16 : index
    %c0_16 = arith.constant 0 : index
    %18 = vector.load %arg3[%c16, %c0_16] : memref<256x32xbf16, #tpu.memory_space<vmem>>, vector<16x32xbf16>
    %cst_17 = arith.constant dense<0.000000e+00> : vector<2x32xf32>
    %19 = tpu.matmul %17, %18, %cst_17 {dimension_numbers = #tpu.dot_dimension_numbers<[1], [0], [0], [1], [0, 0, 1, 1], [], []>} : vector<2x16xbf16>, vector<16x32xbf16>, vector<2x32xf32> -> vector<2x32xf32>
    %20 = arith.addf %15, %19 : vector<2x32xf32>
    %c4 = arith.constant 4 : index
    %c0_18 = arith.constant 0 : index
    %21 = vector.load %arg11[%c4, %c0_18] : memref<32x16xf32, #tpu.memory_space<vmem>>, vector<2x16xf32>
    %22 = arith.truncf %21 : vector<2x16xf32> to vector<2x16xbf16>
    %c32 = arith.constant 32 : index
    %c0_19 = arith.constant 0 : index
    %23 = vector.load %arg3[%c32, %c0_19] : memref<256x32xbf16, #tpu.memory_space<vmem>>, vector<16x32xbf16>
    %cst_20 = arith.constant dense<0.000000e+00> : vector<2x32xf32>
    %24 = tpu.matmul %22, %23, %cst_20 {dimension_numbers = #tpu.dot_dimension_numbers<[1], [0], [0], [1], [0, 0, 1, 1], [], []>} : vector<2x16xbf16>, vector<16x32xbf16>, vector<2x32xf32> -> vector<2x32xf32>
    %25 = arith.addf %20, %24 : vector<2x32xf32>
    %c6 = arith.constant 6 : index
    %c0_21 = arith.constant 0 : index
    %26 = vector.load %arg11[%c6, %c0_21] : memref<32x16xf32, #tpu.memory_space<vmem>>, vector<2x16xf32>
    %27 = arith.truncf %26 : vector<2x16xf32> to vector<2x16xbf16>
    %c48 = arith.constant 48 : index
    %c0_22 = arith.constant 0 : index
    %28 = vector.load %arg3[%c48, %c0_22] : memref<256x32xbf16, #tpu.memory_space<vmem>>, vector<16x32xbf16>
    %cst_23 = arith.constant dense<0.000000e+00> : vector<2x32xf32>
    %29 = tpu.matmul %27, %28, %cst_23 {dimension_numbers = #tpu.dot_dimension_numbers<[1], [0], [0], [1], [0, 0, 1, 1], [], []>} : vector<2x16xbf16>, vector<16x32xbf16>, vector<2x32xf32> -> vector<2x32xf32>
    %30 = arith.addf %25, %29 : vector<2x32xf32>
    %c8 = arith.constant 8 : index
    %c0_24 = arith.constant 0 : index
    %31 = vector.load %arg11[%c8, %c0_24] : memref<32x16xf32, #tpu.memory_space<vmem>>, vector<2x16xf32>
    %32 = arith.truncf %31 : vector<2x16xf32> to vector<2x16xbf16>
    %c64 = arith.constant 64 : index
    %c0_25 = arith.constant 0 : index
    %33 = vector.load %arg3[%c64, %c0_25] : memref<256x32xbf16, #tpu.memory_space<vmem>>, vector<16x32xbf16>
    %cst_26 = arith.constant dense<0.000000e+00> : vector<2x32xf32>
    %34 = tpu.matmul %32, %33, %cst_26 {dimension_numbers = #tpu.dot_dimension_numbers<[1], [0], [0], [1], [0, 0, 1, 1], [], []>} : vector<2x16xbf16>, vector<16x32xbf16>, vector<2x32xf32> -> vector<2x32xf32>
    %35 = arith.addf %30, %34 : vector<2x32xf32>
    %c10 = arith.constant 10 : index
    %c0_27 = arith.constant 0 : index
    %36 = vector.load %arg11[%c10, %c0_27] : memref<32x16xf32, #tpu.memory_space<vmem>>, vector<2x16xf32>
    %37 = arith.truncf %36 : vector<2x16xf32> to vector<2x16xbf16>
    %c80 = arith.constant 80 : index
    %c0_28 = arith.constant 0 : index
    %38 = vector.load %arg3[%c80, %c0_28] : memref<256x32xbf16, #tpu.memory_space<vmem>>, vector<16x32xbf16>
    %cst_29 = arith.constant dense<0.000000e+00> : vector<2x32xf32>
    %39 = tpu.matmul %37, %38, %cst_29 {dimension_numbers = #tpu.dot_dimension_numbers<[1], [0], [0], [1], [0, 0, 1, 1], [], []>} : vector<2x16xbf16>, vector<16x32xbf16>, vector<2x32xf32> -> vector<2x32xf32>
    %40 = arith.addf %35, %39 : vector<2x32xf32>
    %c12 = arith.constant 12 : index
    %c0_30 = arith.constant 0 : index
    %41 = vector.load %arg11[%c12, %c0_30] : memref<32x16xf32, #tpu.memory_space<vmem>>, vector<2x16xf32>
    %42 = arith.truncf %41 : vector<2x16xf32> to vector<2x16xbf16>
    %c96 = arith.constant 96 : index
    %c0_31 = arith.constant 0 : index
    %43 = vector.load %arg3[%c96, %c0_31] : memref<256x32xbf16, #tpu.memory_space<vmem>>, vector<16x32xbf16>
    %cst_32 = arith.constant dense<0.000000e+00> : vector<2x32xf32>
    %44 = tpu.matmul %42, %43, %cst_32 {dimension_numbers = #tpu.dot_dimension_numbers<[1], [0], [0], [1], [0, 0, 1, 1], [], []>} : vector<2x16xbf16>, vector<16x32xbf16>, vector<2x32xf32> -> vector<2x32xf32>
    %45 = arith.addf %40, %44 : vector<2x32xf32>
    %c14 = arith.constant 14 : index
    %c0_33 = arith.constant 0 : index
    %46 = vector.load %arg11[%c14, %c0_33] : memref<32x16xf32, #tpu.memory_space<vmem>>, vector<2x16xf32>
    %47 = arith.truncf %46 : vector<2x16xf32> to vector<2x16xbf16>
    %c112 = arith.constant 112 : index
    %c0_34 = arith.constant 0 : index
    %48 = vector.load %arg3[%c112, %c0_34] : memref<256x32xbf16, #tpu.memory_space<vmem>>, vector<16x32xbf16>
    %cst_35 = arith.constant dense<0.000000e+00> : vector<2x32xf32>
    %49 = tpu.matmul %47, %48, %cst_35 {dimension_numbers = #tpu.dot_dimension_numbers<[1], [0], [0], [1], [0, 0, 1, 1], [], []>} : vector<2x16xbf16>, vector<16x32xbf16>, vector<2x32xf32> -> vector<2x32xf32>
    %50 = arith.addf %45, %49 : vector<2x32xf32>
    %c16_36 = arith.constant 16 : index
    %c0_37 = arith.constant 0 : index
    %51 = vector.load %arg11[%c16_36, %c0_37] : memref<32x16xf32, #tpu.memory_space<vmem>>, vector<2x16xf32>
    %52 = arith.truncf %51 : vector<2x16xf32> to vector<2x16xbf16>
    %c128 = arith.constant 128 : index
    %c0_38 = arith.constant 0 : index
    %53 = vector.load %arg3[%c128, %c0_38] : memref<256x32xbf16, #tpu.memory_space<vmem>>, vector<16x32xbf16>
    %cst_39 = arith.constant dense<0.000000e+00> : vector<2x32xf32>
    %54 = tpu.matmul %52, %53, %cst_39 {dimension_numbers = #tpu.dot_dimension_numbers<[1], [0], [0], [1], [0, 0, 1, 1], [], []>} : vector<2x16xbf16>, vector<16x32xbf16>, vector<2x32xf32> -> vector<2x32xf32>
    %55 = arith.addf %50, %54 : vector<2x32xf32>
    %c18 = arith.constant 18 : index
    %c0_40 = arith.constant 0 : index
    %56 = vector.load %arg11[%c18, %c0_40] : memref<32x16xf32, #tpu.memory_space<vmem>>, vector<2x16xf32>
    %57 = arith.truncf %56 : vector<2x16xf32> to vector<2x16xbf16>
    %c144 = arith.constant 144 : index
    %c0_41 = arith.constant 0 : index
    %58 = vector.load %arg3[%c144, %c0_41] : memref<256x32xbf16, #tpu.memory_space<vmem>>, vector<16x32xbf16>
    %cst_42 = arith.constant dense<0.000000e+00> : vector<2x32xf32>
    %59 = tpu.matmul %57, %58, %cst_42 {dimension_numbers = #tpu.dot_dimension_numbers<[1], [0], [0], [1], [0, 0, 1, 1], [], []>} : vector<2x16xbf16>, vector<16x32xbf16>, vector<2x32xf32> -> vector<2x32xf32>
    %60 = arith.addf %55, %59 : vector<2x32xf32>
    %c20 = arith.constant 20 : index
    %c0_43 = arith.constant 0 : index
    %61 = vector.load %arg11[%c20, %c0_43] : memref<32x16xf32, #tpu.memory_space<vmem>>, vector<2x16xf32>
    %62 = arith.truncf %61 : vector<2x16xf32> to vector<2x16xbf16>
    %c160 = arith.constant 160 : index
    %c0_44 = arith.constant 0 : index
    %63 = vector.load %arg3[%c160, %c0_44] : memref<256x32xbf16, #tpu.memory_space<vmem>>, vector<16x32xbf16>
    %cst_45 = arith.constant dense<0.000000e+00> : vector<2x32xf32>
    %64 = tpu.matmul %62, %63, %cst_45 {dimension_numbers = #tpu.dot_dimension_numbers<[1], [0], [0], [1], [0, 0, 1, 1], [], []>} : vector<2x16xbf16>, vector<16x32xbf16>, vector<2x32xf32> -> vector<2x32xf32>
    %65 = arith.addf %60, %64 : vector<2x32xf32>
    %c22 = arith.constant 22 : index
    %c0_46 = arith.constant 0 : index
    %66 = vector.load %arg11[%c22, %c0_46] : memref<32x16xf32, #tpu.memory_space<vmem>>, vector<2x16xf32>
    %67 = arith.truncf %66 : vector<2x16xf32> to vector<2x16xbf16>
    %c176 = arith.constant 176 : index
    %c0_47 = arith.constant 0 : index
    %68 = vector.load %arg3[%c176, %c0_47] : memref<256x32xbf16, #tpu.memory_space<vmem>>, vector<16x32xbf16>
    %cst_48 = arith.constant dense<0.000000e+00> : vector<2x32xf32>
    %69 = tpu.matmul %67, %68, %cst_48 {dimension_numbers = #tpu.dot_dimension_numbers<[1], [0], [0], [1], [0, 0, 1, 1], [], []>} : vector<2x16xbf16>, vector<16x32xbf16>, vector<2x32xf32> -> vector<2x32xf32>
    %70 = arith.addf %65, %69 : vector<2x32xf32>
    %c24 = arith.constant 24 : index
    %c0_49 = arith.constant 0 : index
    %71 = vector.load %arg11[%c24, %c0_49] : memref<32x16xf32, #tpu.memory_space<vmem>>, vector<2x16xf32>
    %72 = arith.truncf %71 : vector<2x16xf32> to vector<2x16xbf16>
    %c192 = arith.constant 192 : index
    %c0_50 = arith.constant 0 : index
    %73 = vector.load %arg3[%c192, %c0_50] : memref<256x32xbf16, #tpu.memory_space<vmem>>, vector<16x32xbf16>
    %cst_51 = arith.constant dense<0.000000e+00> : vector<2x32xf32>
    %74 = tpu.matmul %72, %73, %cst_51 {dimension_numbers = #tpu.dot_dimension_numbers<[1], [0], [0], [1], [0, 0, 1, 1], [], []>} : vector<2x16xbf16>, vector<16x32xbf16>, vector<2x32xf32> -> vector<2x32xf32>
    %75 = arith.addf %70, %74 : vector<2x32xf32>
    %c26 = arith.constant 26 : index
    %c0_52 = arith.constant 0 : index
    %76 = vector.load %arg11[%c26, %c0_52] : memref<32x16xf32, #tpu.memory_space<vmem>>, vector<2x16xf32>
    %77 = arith.truncf %76 : vector<2x16xf32> to vector<2x16xbf16>
    %c208 = arith.constant 208 : index
    %c0_53 = arith.constant 0 : index
    %78 = vector.load %arg3[%c208, %c0_53] : memref<256x32xbf16, #tpu.memory_space<vmem>>, vector<16x32xbf16>
    %cst_54 = arith.constant dense<0.000000e+00> : vector<2x32xf32>
    %79 = tpu.matmul %77, %78, %cst_54 {dimension_numbers = #tpu.dot_dimension_numbers<[1], [0], [0], [1], [0, 0, 1, 1], [], []>} : vector<2x16xbf16>, vector<16x32xbf16>, vector<2x32xf32> -> vector<2x32xf32>
    %80 = arith.addf %75, %79 : vector<2x32xf32>
    %c28 = arith.constant 28 : index
    %c0_55 = arith.constant 0 : index
    %81 = vector.load %arg11[%c28, %c0_55] : memref<32x16xf32, #tpu.memory_space<vmem>>, vector<2x16xf32>
    %82 = arith.truncf %81 : vector<2x16xf32> to vector<2x16xbf16>
    %c224 = arith.constant 224 : index
    %c0_56 = arith.constant 0 : index
    %83 = vector.load %arg3[%c224, %c0_56] : memref<256x32xbf16, #tpu.memory_space<vmem>>, vector<16x32xbf16>
    %cst_57 = arith.constant dense<0.000000e+00> : vector<2x32xf32>
    %84 = tpu.matmul %82, %83, %cst_57 {dimension_numbers = #tpu.dot_dimension_numbers<[1], [0], [0], [1], [0, 0, 1, 1], [], []>} : vector<2x16xbf16>, vector<16x32xbf16>, vector<2x32xf32> -> vector<2x32xf32>
    %85 = arith.addf %80, %84 : vector<2x32xf32>
    %c30 = arith.constant 30 : index
    %c0_58 = arith.constant 0 : index
    %86 = vector.load %arg11[%c30, %c0_58] : memref<32x16xf32, #tpu.memory_space<vmem>>, vector<2x16xf32>
    %87 = arith.truncf %86 : vector<2x16xf32> to vector<2x16xbf16>
    %c240 = arith.constant 240 : index
    %c0_59 = arith.constant 0 : index
    %88 = vector.load %arg3[%c240, %c0_59] : memref<256x32xbf16, #tpu.memory_space<vmem>>, vector<16x32xbf16>
    %cst_60 = arith.constant dense<0.000000e+00> : vector<2x32xf32>
    %89 = tpu.matmul %87, %88, %cst_60 {dimension_numbers = #tpu.dot_dimension_numbers<[1], [0], [0], [1], [0, 0, 1, 1], [], []>} : vector<2x16xbf16>, vector<16x32xbf16>, vector<2x32xf32> -> vector<2x32xf32>
    %90 = arith.addf %85, %89 : vector<2x32xf32>
    %c0_61 = arith.constant 0 : index
    %c0_62 = arith.constant 0 : index
    %91 = vector.load %arg4[%c0_61, %c0_62] : memref<1x32xf32, #tpu.memory_space<vmem>>, vector<1x32xf32>
    %92 = vector.broadcast %91 : vector<1x32xf32> to vector<2x32xf32>
    %93 = arith.addf %90, %92 : vector<2x32xf32>
    %cst_63 = arith.constant 0.000000e+00 : f32
    %94 = vector.broadcast %cst_63 : f32 to vector<2x32xf32>
    %95 = arith.maximumf %93, %94 : vector<2x32xf32>
    %96 = arith.truncf %95 : vector<2x32xf32> to vector<2x32xbf16>
    %c0_64 = arith.constant 0 : index
    %c0_65 = arith.constant 0 : index
    %97 = vector.load %arg5[%c0_64, %c0_65] : memref<32x32xbf16, #tpu.memory_space<vmem>>, vector<32x32xbf16>
    %cst_66 = arith.constant dense<0.000000e+00> : vector<2x32xf32>
    %98 = tpu.matmul %96, %97, %cst_66 {dimension_numbers = #tpu.dot_dimension_numbers<[1], [0], [0], [1], [0, 0, 1, 1], [], []>} : vector<2x32xbf16>, vector<32x32xbf16>, vector<2x32xf32> -> vector<2x32xf32>
    %99 = arith.addf %9, %98 : vector<2x32xf32>
    %c0_67 = arith.constant 0 : index
    %c0_68 = arith.constant 0 : index
    %100 = vector.load %arg6[%c0_67, %c0_68] : memref<1x32xf32, #tpu.memory_space<vmem>>, vector<1x32xf32>
    %101 = vector.broadcast %100 : vector<1x32xf32> to vector<2x32xf32>
    %102 = arith.addf %99, %101 : vector<2x32xf32>
    %cst_69 = arith.constant 0.000000e+00 : f32
    %103 = vector.broadcast %cst_69 : f32 to vector<2x32xf32>
    %104 = arith.maximumf %102, %103 : vector<2x32xf32>
    %c0_70 = arith.constant 0 : index
    %c0_71 = arith.constant 0 : index
    %105 = vector.load %arg7[%c0_70, %c0_71] : memref<32x4xf32, #tpu.memory_space<vmem>>, vector<32x4xf32>
    %cst_72 = arith.constant dense<0.000000e+00> : vector<2x4xf32>
    %106 = tpu.matmul %104, %105, %cst_72 {dimension_numbers = #tpu.dot_dimension_numbers<[1], [0], [0], [1], [0, 0, 1, 1], [], []>} : vector<2x32xf32>, vector<32x4xf32>, vector<2x4xf32> -> vector<2x4xf32>
    %c0_73 = arith.constant 0 : index
    %c0_74 = arith.constant 0 : index
    %107 = vector.load %arg8[%c0_73, %c0_74] : memref<1x4xf32, #tpu.memory_space<vmem>>, vector<1x4xf32>
    %108 = vector.broadcast %107 : vector<1x4xf32> to vector<2x4xf32>
    %109 = arith.addf %106, %108 : vector<2x4xf32>
    %c0_75 = arith.constant 0 : index
    %c0_76 = arith.constant 0 : index
    %110 = vector.load %arg9[%c0_75, %c0_76] : memref<2x4xf32, #tpu.memory_space<vmem>>, vector<2x4xf32>
    %111 = arith.mulf %109, %110 : vector<2x4xf32>
    %112 = tpu.iota {dimensions = array<i32: 1>} : vector<2x4xi32>
    %cst_77 = arith.constant dense<0xFF800000> : vector<2xf32>
    %113 = vector.multi_reduction <maximumf>, %111, %cst_77 [1] : vector<2x4xf32> to vector<2xf32>
    %114 = vector.shape_cast %113 : vector<2xf32> to vector<2x1xf32>
    %115 = vector.broadcast %114 : vector<2x1xf32> to vector<2x4xf32>
    %116 = arith.cmpf oeq, %111, %115 : vector<2x4xf32>
    %c4_i32 = arith.constant 4 : i32
    %117 = vector.broadcast %c4_i32 : i32 to vector<2x4xi32>
    %118 = arith.select %116, %112, %117 : vector<2x4xi1>, vector<2x4xi32>
    %cst_78 = arith.constant dense<2147483647> : vector<2xi32>
    %119 = vector.multi_reduction <minsi>, %118, %cst_78 [1] : vector<2x4xi32> to vector<2xi32>
    %120 = vector.shape_cast %119 : vector<2xi32> to vector<2x1xi32>
    %c0_79 = arith.constant 0 : index
    %c0_80 = arith.constant 0 : index
    %121 = vector.load %arg10[%c0_79, %c0_80] : memref<2x1xi32, #tpu.memory_space<vmem>>, vector<2x1xi32>
    tpu.vector_store %arg10[%c0_79, %c0_80], %120 {strides = array<i32>} : memref<2x1xi32, #tpu.memory_space<vmem>>, vector<2x1xi32>,
    return
  }
}

</mosaic_0001>

<llo_original>
// kernel: wrapper_net_forward.1
$region0: #{wrapper_net_forward.1}
  #allocation0 [shape = 'u32[]', space=smem, size = 0x4, offset = 0x4, fixed_abs, tag = 'smem constant byte address 0x4 - core index']
  #allocation1 [shape = 'u32[72,128]{1,0:T(1,128)}', space=vmem, size = 0x9000, scoped, tag = 'internal scratch']
  #allocation2 [shape = 'f32[32,16]{1,0:T(8,128)}', space=vmem, size = 0x4000, scoped, tag = 'scratch operand']
  %s0 = inlined_call_operand.vmem [shape: bf16[32,192], index: 0, kind: input, shape index: {}]
  %s1 = inlined_call_operand.vmem [shape: bf16[192,16], index: 1, kind: input, shape index: {}]
  %s2 = inlined_call_operand.vmem [shape: f32[1,16], index: 2, kind: input, shape index: {}]
  %s3 = inlined_call_operand.vmem [shape: bf16[256,32], index: 3, kind: input, shape index: {}]
  %s4 = inlined_call_operand.vmem [shape: f32[1,32], index: 4, kind: input, shape index: {}]
  %s5 = inlined_call_operand.vmem [shape: bf16[32,32], index: 5, kind: input, shape index: {}]
  %s6 = inlined_call_operand.vmem [shape: f32[1,32], index: 6, kind: input, shape index: {}]
  %s7 = inlined_call_operand.vmem [shape: f32[32,4], index: 7, kind: input, shape index: {}]
  %s8 = inlined_call_operand.vmem [shape: f32[1,4], index: 8, kind: input, shape index: {}]
  %s9 = inlined_call_operand.vmem [shape: f32[2,4], index: 9, kind: input, shape index: {}]
  %s10 = inlined_call_operand.vmem [shape: s32[2,1], index: 10, kind: output, shape index: {}]
  %s11 = sld [smem:[#allocation0]]
  $region50: #{wrapper_net_forward.1} parent=0
    _
  %s13 = ssub.s32 1, %s11
  %s14 = scalar_select 0, %s13, %s11
  // Predicated region
  $region2: #{wrapper_net_forward.1} parent=0 // pred_check
    _
  $region3: #{wrapper_net_forward.1} parent=0 // pred_check_branch
    %16 = sbr.rel (0) target = $region5
  $region4: #{wrapper_net_forward.1} parent=0 // pred_region
    _
  $region5: #{wrapper_net_forward.1} parent=0 // pred_fallthru
    _
  // Predicated region
  $region6: #{wrapper_net_forward.1} parent=0 // pred_check
    _
  $region7: #{wrapper_net_forward.1} parent=0 // pred_check_branch
    %18 = sbr.rel (0) target = $region9
  $region8: #{wrapper_net_forward.1} parent=0 // pred_region
    _
  $region9: #{wrapper_net_forward.1} parent=0 // pred_fallthru
    _
  // Predicated region
  $region10: #{wrapper_net_forward.1} parent=0 // pred_check
    _
  $region11: #{wrapper_net_forward.1} parent=0 // pred_check_branch
    %20 = sbr.rel (0) target = $region13
  $region12: #{wrapper_net_forward.1} parent=0 // pred_region
    _
  $region13: #{wrapper_net_forward.1} parent=0 // pred_fallthru
    _
  // Predicated region
  $region14: #{wrapper_net_forward.1} parent=0 // pred_check
    _
  $region15: #{wrapper_net_forward.1} parent=0 // pred_check_branch
    %22 = sbr.rel (0) target = $region17
  $region16: #{wrapper_net_forward.1} parent=0 // pred_region
    _
  $region17: #{wrapper_net_forward.1} parent=0 // pred_fallthru
    _
  // Predicated region
  $region18: #{wrapper_net_forward.1} parent=0 // pred_check
    _
  $region19: #{wrapper_net_forward.1} parent=0 // pred_check_branch
    %24 = sbr.rel (0) target = $region21
  $region20: #{wrapper_net_forward.1} parent=0 // pred_region
    _
  $region21: #{wrapper_net_forward.1} parent=0 // pred_fallthru
    _
  // Predicated region
  $region22: #{wrapper_net_forward.1} parent=0 // pred_check
    _
  $region23: #{wrapper_net_forward.1} parent=0 // pred_check_branch
    %26 = sbr.rel (0) target = $region25
  $region24: #{wrapper_net_forward.1} parent=0 // pred_region
    _
  $region25: #{wrapper_net_forward.1} parent=0 // pred_fallthru
    _
  // Predicated region
  $region26: #{wrapper_net_forward.1} parent=0 // pred_check
    _
  $region27: #{wrapper_net_forward.1} parent=0 // pred_check_branch
    %28 = sbr.rel (0) target = $region29
  $region28: #{wrapper_net_forward.1} parent=0 // pred_region
    _
  $region29: #{wrapper_net_forward.1} parent=0 // pred_fallthru
    _
  // Predicated region
  $region30: #{wrapper_net_forward.1} parent=0 // pred_check
    _
  $region31: #{wrapper_net_forward.1} parent=0 // pred_check_branch
    %30 = sbr.rel (0) target = $region33
  $region32: #{wrapper_net_forward.1} parent=0 // pred_region
    _
  $region33: #{wrapper_net_forward.1} parent=0 // pred_fallthru
    _
  // Predicated region
  $region34: #{wrapper_net_forward.1} parent=0 // pred_check
    _
  $region35: #{wrapper_net_forward.1} parent=0 // pred_check_branch
    %32 = sbr.rel (0) target = $region37
  $region36: #{wrapper_net_forward.1} parent=0 // pred_region
    _
  $region37: #{wrapper_net_forward.1} parent=0 // pred_fallthru
    _
  // Predicated region
  $region38: #{wrapper_net_forward.1} parent=0 // pred_check
    _
  $region39: #{wrapper_net_forward.1} parent=0 // pred_check_branch
    %34 = sbr.rel (0) target = $region41
  $region40: #{wrapper_net_forward.1} parent=0 // pred_region
    _
  $region41: #{wrapper_net_forward.1} parent=0 // pred_fallthru
    _
  %v36 = vld [vmem:[%s0] sm:$0xff]
  %v37 = vld [vmem:[%s0 + $0x8] sm:$0xff]
  %v38 = vld [vmem:[%s0 + $0x10] sm:$0xff]
  %v39 = vld [vmem:[%s0 + $0x18] sm:$0xff]
  %v40 = vld [vmem:[%s1] sm:$0xf]
  %v41 = vld [vmem:[%s1 + $0x4] sm:$0xf]
  %v42 = vld [vmem:[%s1 + $0x8] sm:$0xf]
  %v43 = vld [vmem:[%s1 + $0xc] sm:$0xf]
  %v44 = vld [vmem:[%s1 + $0x10] sm:$0xf]
  %v45 = vld [vmem:[%s1 + $0x14] sm:$0xf]
  %v46 = vld [vmem:[%s1 + $0x18] sm:$0xf]
  %v47 = vld [vmem:[%s1 + $0x1c] sm:$0xf]
  %v48 = vld [vmem:[%s1 + $0x20] sm:$0xf]
  %v49 = vld [vmem:[%s1 + $0x24] sm:$0xf]
  %v50 = vld [vmem:[%s1 + $0x28] sm:$0xf]
  %v51 = vld [vmem:[%s1 + $0x2c] sm:$0xf]
  %v52 = vld [vmem:[%s1 + $0x30] sm:$0xf]
  %v53 = vld [vmem:[%s1 + $0x34] sm:$0xf]
  %v54 = vld [vmem:[%s1 + $0x38] sm:$0xf]
  %v55 = vld [vmem:[%s1 + $0x3c] sm:$0xf]
  %v56 = vld [vmem:[%s1 + $0x40] sm:$0xf]
  %v57 = vld [vmem:[%s1 + $0x44] sm:$0xf]
  %v58 = vld [vmem:[%s1 + $0x48] sm:$0xf]
  %v59 = vld [vmem:[%s1 + $0x4c] sm:$0xf]
  %v60 = vld [vmem:[%s1 + $0x50] sm:$0xf]
  %v61 = vld [vmem:[%s1 + $0x54] sm:$0xf]
  %v62 = vld [vmem:[%s1 + $0x58] sm:$0xf]
  %v63 = vld [vmem:[%s1 + $0x5c] sm:$0xf]
  %v64 = vld [vmem:[%s2] sm:$0x1]
  %v66 = vperm.slane %v64, 0
  %v72 = vunpack.c.l.b16 %v36
  %v73 = vunpack.c.h.b16 %v36
  %v74 = vunpack.c.l.b16 %v37
  %v75 = vunpack.c.h.b16 %v37
  %v76 = vunpack.c.l.b16 %v38
  %v77 = vunpack.c.h.b16 %v38
  %v78 = vunpack.c.l.b16 %v39
  %v79 = vunpack.c.h.b16 %v39
  %v80 = vpack.c.b16 %v74, %v72
  %v81 = vpack.c.b16 %v75, %v73
  %v82 = vpack.c.b16 %v78, %v76
  %v83 = vpack.c.b16 %v79, %v77
  %v110 = vunpack.c.l.b16 %v40
  %v111 = vunpack.c.l.b16 %v41
  %v112 = vunpack.c.l.b16 %v42
  %v113 = vunpack.c.l.b16 %v43
  %v114 = vunpack.c.l.b16 %v44
  %v115 = vunpack.c.l.b16 %v45
  %v116 = vunpack.c.l.b16 %v46
  %v117 = vunpack.c.l.b16 %v47
  %v118 = vunpack.c.l.b16 %v48
  %v119 = vunpack.c.l.b16 %v49
  %v120 = vunpack.c.l.b16 %v50
  %v121 = vunpack.c.l.b16 %v51
  %v122 = vunpack.c.l.b16 %v52
  %v123 = vunpack.c.l.b16 %v53
  %v124 = vunpack.c.l.b16 %v54
  %v125 = vunpack.c.l.b16 %v55
  %v126 = vunpack.c.l.b16 %v56
  %v127 = vunpack.c.l.b16 %v57
  %v128 = vunpack.c.l.b16 %v58
  %v129 = vunpack.c.l.b16 %v59
  %v130 = vunpack.c.l.b16 %v60
  %v131 = vunpack.c.l.b16 %v61
  %v132 = vunpack.c.l.b16 %v62
  %v133 = vunpack.c.l.b16 %v63
  %v134 = vpack.c.b16 %v111, %v110
  %v135 = vpack.c.b16 %v113, %v112
  %v136 = vpack.c.b16 %v115, %v114
  %v137 = vpack.c.b16 %v117, %v116
  %v138 = vpack.c.b16 %v119, %v118
  %v139 = vpack.c.b16 %v121, %v120
  %v140 = vpack.c.b16 %v123, %v122
  %v141 = vpack.c.b16 %v125, %v124
  %v142 = vpack.c.b16 %v127, %v126
  %v143 = vpack.c.b16 %v129, %v128
  %v144 = vpack.c.b16 %v131, %v130
  %v145 = vpack.c.b16 %v133, %v132
  %vm158 = vcmask 523264
  %v160 = vsel %vm158, %v81, 0
  %v163 = vsel %vm158, %v83, 0
  %165 = vmatpush.bf16.msra.mxu0 %v141
  %166 = vmatpush.bf16.msra.mxu0 %v140
  %167 = vmatpush.bf16.msra.mxu0 %v139
  %168 = vmatpush.bf16.msra.mxu0 %v138
  %169 = vmatpush.bf16.msra.mxu0 %v137
  %170 = vmatpush.bf16.msra.mxu0 %v136
  %171 = vmatpush.bf16.msra.mxu0 %v135
  %172 = vmatpush.bf16.msra.mxu0 %v134
  %173 = vmatmul.bf16.gmra.mxu0 %v80
  %v174 = vpop.f32.mrf.mxu0
  %v175 = vadd.f32 %v66, %v174
  %v176 = vpop.f32.mrf.mxu0
  %v177 = vadd.f32 %v66, %v176
  %178 = vmatmul.bf16.gmra.mxu0 %v82
  %v179 = vpop.f32.mrf.mxu0
  %v180 = vadd.f32 %v66, %v179
  %v181 = vpop.f32.mrf.mxu0
  %v182 = vadd.f32 %v66, %v181
  %183 = vdwg.mxu0
  %184 = vmatpush.bf16.msra.mxu0 0
  %185 = vmatpush.bf16.msra.mxu0 0
  %186 = vmatpush.bf16.msra.mxu0 0
  %187 = vmatpush.bf16.msra.mxu0 0
  %188 = vmatpush.bf16.msra.mxu0 %v145
  %189 = vmatpush.bf16.msra.mxu0 %v144
  %190 = vmatpush.bf16.msra.mxu0 %v143
  %191 = vmatpush.bf16.msra.mxu0 %v142
  %192 = vmatmul.bf16.gmra.mxu0 %v160
  %v193 = vpop.f32.mrf.mxu0
  %v194 = vadd.f32 %v175, %v193
  %v195 = vpop.f32.mrf.mxu0
  %v196 = vadd.f32 %v177, %v195
  %197 = vmatmul.bf16.gmra.mxu0 %v163
  %v198 = vpop.f32.mrf.mxu0
  %v199 = vadd.f32 %v180, %v198
  %v200 = vpop.f32.mrf.mxu0
  %v201 = vadd.f32 %v182, %v200
  %202 = vdwg.mxu0
  %v203 = vmax.f32 %v194, 0.0
  %v204 = vmax.f32 %v196, 0.0
  %v205 = vmax.f32 %v199, 0.0
  %v206 = vmax.f32 %v201, 0.0
  %vm207 = vcmask 130048
  %208 = vst.msk [vmem:[#allocation2] sm:$0xff] %vm207, %v203
  %209 = vst.msk [vmem:[#allocation2 + $0x8] sm:$0xff] %vm207, %v204
  %210 = vst.msk [vmem:[#allocation2 + $0x10] sm:$0xff] %vm207, %v205
  %211 = vst.msk [vmem:[#allocation2 + $0x18] sm:$0xff] %vm207, %v206
  %v212 = vld [vmem:[#allocation2] sm:$0x3]
  %v213 = vpack.c.bf16 %v212, %v212
  %v214 = vld [vmem:[%s3] sm:$0xf]
  %v215 = vld [vmem:[%s3 + $0x4] sm:$0xf]
  %v216 = vld [vmem:[#allocation2 + $0x2] sm:$0x3]
  %v217 = vpack.c.bf16 %v216, %v216
  %v218 = vld [vmem:[%s3 + $0x8] sm:$0xf]
  %v219 = vld [vmem:[%s3 + $0xc] sm:$0xf]
  %v222 = vunpack.c.l.b16 %v218
  %v223 = vunpack.c.l.b16 %v219
  %v224 = vpack.c.b16 %v223, %v222
  %v227 = vsel %vm207, %v217, 0
  %229 = vmatpush.bf16.msra.mxu0 0
  %230 = vmatpush.bf16.msra.mxu0 0
  %231 = vmatpush.bf16.msra.mxu0 0
  %232 = vmatpush.bf16.msra.mxu0 0
  %233 = vmatpush.bf16.msra.mxu0 0
  %234 = vmatpush.bf16.msra.mxu0 0
  %235 = vmatpush.bf16.msra.mxu0 0
  %236 = vmatpush.bf16.msra.mxu0 %v224
  %237 = vmatmul.bf16.gmra.mxu0 %v227
  %v238 = vpop.f32.mrf.mxu0
  %v239 = vadd.f32 0.0, %v238
  %v240 = vpop.f32.mrf.mxu0
  %241 = vdwg.mxu0
  %v244 = vunpack.c.l.b16 %v214
  %v245 = vunpack.c.l.b16 %v215
  %v246 = vpack.c.b16 %v245, %v244
  %v249 = vsel %vm207, %v213, 0
  %251 = vmatpush.bf16.msra.mxu0 0
  %252 = vmatpush.bf16.msra.mxu0 0
  %253 = vmatpush.bf16.msra.mxu0 0
  %254 = vmatpush.bf16.msra.mxu0 0
  %255 = vmatpush.bf16.msra.mxu0 0
  %256 = vmatpush.bf16.msra.mxu0 0
  %257 = vmatpush.bf16.msra.mxu0 0
  %258 = vmatpush.bf16.msra.mxu0 %v246
  %259 = vmatmul.bf16.gmra.mxu0 %v249
  %v260 = vpop.f32.mrf.mxu0
  %v261 = vadd.f32 %v239, %v260
  %v262 = vpop.f32.mrf.mxu0
  %263 = vdwg.mxu0
  %v264 = vld [vmem:[#allocation2 + $0x4] sm:$0x3]
  %v265 = vpack.c.bf16 %v264, %v264
  %v266 = vld [vmem:[%s3 + $0x10] sm:$0xf]
  %v267 = vld [vmem:[%s3 + $0x14] sm:$0xf]
  %v270 = vunpack.c.l.b16 %v266
  %v271 = vunpack.c.l.b16 %v267
  %v272 = vpack.c.b16 %v271, %v270
  %v275 = vsel %vm207, %v265, 0
  %277 = vmatpush.bf16.msra.mxu0 0
  %278 = vmatpush.bf16.msra.mxu0 0
  %279 = vmatpush.bf16.msra.mxu0 0
  %280 = vmatpush.bf16.msra.mxu0 0
  %281 = vmatpush.bf16.msra.mxu0 0
  %282 = vmatpush.bf16.msra.mxu0 0
  %283 = vmatpush.bf16.msra.mxu0 0
  %284 = vmatpush.bf16.msra.mxu0 %v272
  %285 = vmatmul.bf16.gmra.mxu0 %v275
  %v286 = vpop.f32.mrf.mxu0
  %v287 = vadd.f32 0.0, %v286
  %v288 = vpop.f32.mrf.mxu0
  %289 = vdwg.mxu0
  %v290 = vadd.f32 %v261, %v287
  %v291 = vld [vmem:[#allocation2 + $0x6] sm:$0x3]
  %v292 = vpack.c.bf16 %v291, %v291
  %v293 = vld [vmem:[%s3 + $0x18] sm:$0xf]
  %v294 = vld [vmem:[%s3 + $0x1c] sm:$0xf]
  %v297 = vunpack.c.l.b16 %v293
  %v298 = vunpack.c.l.b16 %v294
  %v299 = vpack.c.b16 %v298, %v297
  %v302 = vsel %vm207, %v292, 0
  %304 = vmatpush.bf16.msra.mxu0 0
  %305 = vmatpush.bf16.msra.mxu0 0
  %306 = vmatpush.bf16.msra.mxu0 0
  %307 = vmatpush.bf16.msra.mxu0 0
  %308 = vmatpush.bf16.msra.mxu0 0
  %309 = vmatpush.bf16.msra.mxu0 0
  %310 = vmatpush.bf16.msra.mxu0 0
  %311 = vmatpush.bf16.msra.mxu0 %v299
  %312 = vmatmul.bf16.gmra.mxu0 %v302
  %v313 = vpop.f32.mrf.mxu0
  %v314 = vadd.f32 0.0, %v313
  %v315 = vpop.f32.mrf.mxu0
  %316 = vdwg.mxu0
  %v317 = vadd.f32 %v290, %v314
  %v318 = vld [vmem:[#allocation2 + $0x8] sm:$0x3]
  %v319 = vpack.c.bf16 %v318, %v318
  %v320 = vld [vmem:[%s3 + $0x20] sm:$0xf]
  %v321 = vld [vmem:[%s3 + $0x24] sm:$0xf]
  %v324 = vunpack.c.l.b16 %v320
  %v325 = vunpack.c.l.b16 %v321
  %v326 = vpack.c.b16 %v325, %v324
  %v329 = vsel %vm207, %v319, 0
  %331 = vmatpush.bf16.msra.mxu0 0
  %332 = vmatpush.bf16.msra.mxu0 0
  %333 = vmatpush.bf16.msra.mxu0 0
  %334 = vmatpush.bf16.msra.mxu0 0
  %335 = vmatpush.bf16.msra.mxu0 0
  %336 = vmatpush.bf16.msra.mxu0 0
  %337 = vmatpush.bf16.msra.mxu0 0
  %338 = vmatpush.bf16.msra.mxu0 %v326
  %339 = vmatmul.bf16.gmra.mxu0 %v329
  %v340 = vpop.f32.mrf.mxu0
  %v341 = vadd.f32 0.0, %v340
  %v342 = vpop.f32.mrf.mxu0
  %343 = vdwg.mxu0
  %v344 = vadd.f32 %v317, %v341
  %v345 = vld [vmem:[#allocation2 + $0xa] sm:$0x3]
  %v346 = vpack.c.bf16 %v345, %v345
  %v347 = vld [vmem:[%s3 + $0x28] sm:$0xf]
  %v348 = vld [vmem:[%s3 + $0x2c] sm:$0xf]
  %v351 = vunpack.c.l.b16 %v347
  %v352 = vunpack.c.l.b16 %v348
  %v353 = vpack.c.b16 %v352, %v351
  %v356 = vsel %vm207, %v346, 0
  %358 = vmatpush.bf16.msra.mxu0 0
  %359 = vmatpush.bf16.msra.mxu0 0
  %360 = vmatpush.bf16.msra.mxu0 0
  %361 = vmatpush.bf16.msra.mxu0 0
  %362 = vmatpush.bf16.msra.mxu0 0
  %363 = vmatpush.bf16.msra.mxu0 0
  %364 = vmatpush.bf16.msra.mxu0 0
  %365 = vmatpush.bf16.msra.mxu0 %v353
  %366 = vmatmul.bf16.gmra.mxu0 %v356
  %v367 = vpop.f32.mrf.mxu0
  %v368 = vadd.f32 0.0, %v367
  %v369 = vpop.f32.mrf.mxu0
  %370 = vdwg.mxu0
  %v371 = vadd.f32 %v344, %v368
  %v372 = vld [vmem:[#allocation2 + $0xc] sm:$0x3]
  %v373 = vpack.c.bf16 %v372, %v372
  %v374 = vld [vmem:[%s3 + $0x30] sm:$0xf]
  %v375 = vld [vmem:[%s3 + $0x34] sm:$0xf]
  %v378 = vunpack.c.l.b16 %v374
  %v379 = vunpack.c.l.b16 %v375
  %v380 = vpack.c.b16 %v379, %v378
  %v383 = vsel %vm207, %v373, 0
  %385 = vmatpush.bf16.msra.mxu0 0
  %386 = vmatpush.bf16.msra.mxu0 0
  %387 = vmatpush.bf16.msra.mxu0 0
  %388 = vmatpush.bf16.msra.mxu0 0
  %389 = vmatpush.bf16.msra.mxu0 0
  %390 = vmatpush.bf16.msra.mxu0 0
  %391 = vmatpush.bf16.msra.mxu0 0
  %392 = vmatpush.bf16.msra.mxu0 %v380
  %393 = vmatmul.bf16.gmra.mxu0 %v383
  %v394 = vpop.f32.mrf.mxu0
  %v395 = vadd.f32 0.0, %v394
  %v396 = vpop.f32.mrf.mxu0
  %397 = vdwg.mxu0
  %v398 = vadd.f32 %v371, %v395
  %v399 = vld [vmem:[#allocation2 + $0xe] sm:$0x3]
  %v400 = vpack.c.bf16 %v399, %v399
  %v401 = vld [vmem:[%s3 + $0x38] sm:$0xf]
  %v402 = vld [vmem:[%s3 + $0x3c] sm:$0xf]
  %v405 = vunpack.c.l.b16 %v401
  %v406 = vunpack.c.l.b16 %v402
  %v407 = vpack.c.b16 %v406, %v405
  %v410 = vsel %vm207, %v400, 0
  %412 = vmatpush.bf16.msra.mxu0 0
  %413 = vmatpush.bf16.msra.mxu0 0
  %414 = vmatpush.bf16.msra.mxu0 0
  %415 = vmatpush.bf16.msra.mxu0 0
  %416 = vmatpush.bf16.msra.mxu0 0
  %417 = vmatpush.bf16.msra.mxu0 0
  %418 = vmatpush.bf16.msra.mxu0 0
  %419 = vmatpush.bf16.msra.mxu0 %v407
  %420 = vmatmul.bf16.gmra.mxu0 %v410
  %v421 = vpop.f32.mrf.mxu0
  %v422 = vadd.f32 0.0, %v421
  %v423 = vpop.f32.mrf.mxu0
  %424 = vdwg.mxu0
  %v425 = vadd.f32 %v398, %v422
  %v426 = vld [vmem:[#allocation2 + $0x10] sm:$0x3]
  %v427 = vpack.c.bf16 %v426, %v426
  %v428 = vld [vmem:[%s3 + $0x40] sm:$0xf]
  %v429 = vld [vmem:[%s3 + $0x44] sm:$0xf]
  %v432 = vunpack.c.l.b16 %v428
  %v433 = vunpack.c.l.b16 %v429
  %v434 = vpack.c.b16 %v433, %v432
  %v437 = vsel %vm207, %v427, 0
  %439 = vmatpush.bf16.msra.mxu0 0
  %440 = vmatpush.bf16.msra.mxu0 0
  %441 = vmatpush.bf16.msra.mxu0 0
  %442 = vmatpush.bf16.msra.mxu0 0
  %443 = vmatpush.bf16.msra.mxu0 0
  %444 = vmatpush.bf16.msra.mxu0 0
  %445 = vmatpush.bf16.msra.mxu0 0
  %446 = vmatpush.bf16.msra.mxu0 %v434
  %447 = vmatmul.bf16.gmra.mxu0 %v437
  %v448 = vpop.f32.mrf.mxu0
  %v449 = vadd.f32 0.0, %v448
  %v450 = vpop.f32.mrf.mxu0
  %451 = vdwg.mxu0
  %v452 = vadd.f32 %v425, %v449
  %v453 = vld [vmem:[#allocation2 + $0x12] sm:$0x3]
  %v454 = vpack.c.bf16 %v453, %v453
  %v455 = vld [vmem:[%s3 + $0x48] sm:$0xf]
  %v456 = vld [vmem:[%s3 + $0x4c] sm:$0xf]
  %v459 = vunpack.c.l.b16 %v455
  %v460 = vunpack.c.l.b16 %v456
  %v461 = vpack.c.b16 %v460, %v459
  %v464 = vsel %vm207, %v454, 0
  %466 = vmatpush.bf16.msra.mxu0 0
  %467 = vmatpush.bf16.msra.mxu0 0
  %468 = vmatpush.bf16.msra.mxu0 0
  %469 = vmatpush.bf16.msra.mxu0 0
  %470 = vmatpush.bf16.msra.mxu0 0
  %471 = vmatpush.bf16.msra.mxu0 0
  %472 = vmatpush.bf16.msra.mxu0 0
  %473 = vmatpush.bf16.msra.mxu0 %v461
  %474 = vmatmul.bf16.gmra.mxu0 %v464
  %v475 = vpop.f32.mrf.mxu0
  %v476 = vadd.f32 0.0, %v475
  %v477 = vpop.f32.mrf.mxu0
  %478 = vdwg.mxu0
  %v479 = vadd.f32 %v452, %v476
  %v480 = vld [vmem:[#allocation2 + $0x14] sm:$0x3]
  %v481 = vpack.c.bf16 %v480, %v480
  %v482 = vld [vmem:[%s3 + $0x50] sm:$0xf]
  %v483 = vld [vmem:[%s3 + $0x54] sm:$0xf]
  %v486 = vunpack.c.l.b16 %v482
  %v487 = vunpack.c.l.b16 %v483
  %v488 = vpack.c.b16 %v487, %v486
  %v491 = vsel %vm207, %v481, 0
  %493 = vmatpush.bf16.msra.mxu0 0
  %494 = vmatpush.bf16.msra.mxu0 0
  %495 = vmatpush.bf16.msra.mxu0 0
  %496 = vmatpush.bf16.msra.mxu0 0
  %497 = vmatpush.bf16.msra.mxu0 0
  %498 = vmatpush.bf16.msra.mxu0 0
  %499 = vmatpush.bf16.msra.mxu0 0
  %500 = vmatpush.bf16.msra.mxu0 %v488
  %501 = vmatmul.bf16.gmra.mxu0 %v491
  %v502 = vpop.f32.mrf.mxu0
  %v503 = vadd.f32 0.0, %v502
  %v504 = vpop.f32.mrf.mxu0
  %505 = vdwg.mxu0
  %v506 = vadd.f32 %v479, %v503
  %v507 = vld [vmem:[#allocation2 + $0x16] sm:$0x3]
  %v508 = vpack.c.bf16 %v507, %v507
  %v509 = vld [vmem:[%s3 + $0x58] sm:$0xf]
  %v510 = vld [vmem:[%s3 + $0x5c] sm:$0xf]
  %v513 = vunpack.c.l.b16 %v509
  %v514 = vunpack.c.l.b16 %v510
  %v515 = vpack.c.b16 %v514, %v513
  %v518 = vsel %vm207, %v508, 0
  %520 = vmatpush.bf16.msra.mxu0 0
  %521 = vmatpush.bf16.msra.mxu0 0
  %522 = vmatpush.bf16.msra.mxu0 0
  %523 = vmatpush.bf16.msra.mxu0 0
  %524 = vmatpush.bf16.msra.mxu0 0
  %525 = vmatpush.bf16.msra.mxu0 0
  %526 = vmatpush.bf16.msra.mxu0 0
  %527 = vmatpush.bf16.msra.mxu0 %v515
  %528 = vmatmul.bf16.gmra.mxu0 %v518
  %v529 = vpop.f32.mrf.mxu0
  %v530 = vadd.f32 0.0, %v529
  %v531 = vpop.f32.mrf.mxu0
  %532 = vdwg.mxu0
  %v533 = vadd.f32 %v506, %v530
  %v534 = vld [vmem:[#allocation2 + $0x18] sm:$0x3]
  %v535 = vpack.c.bf16 %v534, %v534
  %v536 = vld [vmem:[%s3 + $0x60] sm:$0xf]
  %v537 = vld [vmem:[%s3 + $0x64] sm:$0xf]
  %v540 = vunpack.c.l.b16 %v536
  %v541 = vunpack.c.l.b16 %v537
  %v542 = vpack.c.b16 %v541, %v540
  %v545 = vsel %vm207, %v535, 0
  %547 = vmatpush.bf16.msra.mxu0 0
  %548 = vmatpush.bf16.msra.mxu0 0
  %549 = vmatpush.bf16.msra.mxu0 0
  %550 = vmatpush.bf16.msra.mxu0 0
  %551 = vmatpush.bf16.msra.mxu0 0
  %552 = vmatpush.bf16.msra.mxu0 0
  %553 = vmatpush.bf16.msra.mxu0 0
  %554 = vmatpush.bf16.msra.mxu0 %v542
  %555 = vmatmul.bf16.gmra.mxu0 %v545
  %v556 = vpop.f32.mrf.mxu0
  %v557 = vadd.f32 0.0, %v556
  %v558 = vpop.f32.mrf.mxu0
  %559 = vdwg.mxu0
  %v560 = vadd.f32 %v533, %v557
  %v561 = vld [vmem:[#allocation2 + $0x1a] sm:$0x3]
  %v562 = vpack.c.bf16 %v561, %v561
  %v563 = vld [vmem:[%s3 + $0x68] sm:$0xf]
  %v564 = vld [vmem:[%s3 + $0x6c] sm:$0xf]
  %v567 = vunpack.c.l.b16 %v563
  %v568 = vunpack.c.l.b16 %v564
  %v569 = vpack.c.b16 %v568, %v567
  %v572 = vsel %vm207, %v562, 0
  %574 = vmatpush.bf16.msra.mxu0 0
  %575 = vmatpush.bf16.msra.mxu0 0
  %576 = vmatpush.bf16.msra.mxu0 0
  %577 = vmatpush.bf16.msra.mxu0 0
  %578 = vmatpush.bf16.msra.mxu0 0
  %579 = vmatpush.bf16.msra.mxu0 0
  %580 = vmatpush.bf16.msra.mxu0 0
  %581 = vmatpush.bf16.msra.mxu0 %v569
  %582 = vmatmul.bf16.gmra.mxu0 %v572
  %v583 = vpop.f32.mrf.mxu0
  %v584 = vadd.f32 0.0, %v583
  %v585 = vpop.f32.mrf.mxu0
  %586 = vdwg.mxu0
  %v587 = vadd.f32 %v560, %v584
  %v588 = vld [vmem:[#allocation2 + $0x1c] sm:$0x3]
  %v589 = vpack.c.bf16 %v588, %v588
  %v590 = vld [vmem:[%s3 + $0x70] sm:$0xf]
  %v591 = vld [vmem:[%s3 + $0x74] sm:$0xf]
  %v594 = vunpack.c.l.b16 %v590
  %v595 = vunpack.c.l.b16 %v591
  %v596 = vpack.c.b16 %v595, %v594
  %v599 = vsel %vm207, %v589, 0
  %601 = vmatpush.bf16.msra.mxu0 0
  %602 = vmatpush.bf16.msra.mxu0 0
  %603 = vmatpush.bf16.msra.mxu0 0
  %604 = vmatpush.bf16.msra.mxu0 0
  %605 = vmatpush.bf16.msra.mxu0 0
  %606 = vmatpush.bf16.msra.mxu0 0
  %607 = vmatpush.bf16.msra.mxu0 0
  %608 = vmatpush.bf16.msra.mxu0 %v596
  %609 = vmatmul.bf16.gmra.mxu0 %v599
  %v610 = vpop.f32.mrf.mxu0
  %v611 = vadd.f32 0.0, %v610
  %v612 = vpop.f32.mrf.mxu0
  %613 = vdwg.mxu0
  %v614 = vadd.f32 %v587, %v611
  %v615 = vld [vmem:[#allocation2 + $0x1e] sm:$0x3]
  %v616 = vpack.c.bf16 %v615, %v615
  %v617 = vld [vmem:[%s3 + $0x78] sm:$0xf]
  %v618 = vld [vmem:[%s3 + $0x7c] sm:$0xf]
  %v621 = vunpack.c.l.b16 %v617
  %v622 = vunpack.c.l.b16 %v618
  %v623 = vpack.c.b16 %v622, %v621
  %v626 = vsel %vm207, %v616, 0
  %628 = vmatpush.bf16.msra.mxu0 0
  %629 = vmatpush.bf16.msra.mxu0 0
  %630 = vmatpush.bf16.msra.mxu0 0
  %631 = vmatpush.bf16.msra.mxu0 0
  %632 = vmatpush.bf16.msra.mxu0 0
  %633 = vmatpush.bf16.msra.mxu0 0
  %634 = vmatpush.bf16.msra.mxu0 0
  %635 = vmatpush.bf16.msra.mxu0 %v623
  %636 = vmatmul.bf16.gmra.mxu0 %v626
  %v637 = vpop.f32.mrf.mxu0
  %v638 = vadd.f32 0.0, %v637
  %v639 = vpop.f32.mrf.mxu0
  %640 = vdwg.mxu0
  %v641 = vadd.f32 %v614, %v638
  %v642 = vld [vmem:[%s4] sm:$0x1]
  %v644 = vperm.slane %v642, 0
  %v646 = vadd.f32 %v641, %v644
  %v647 = vmax.f32 %v646, 0.0
  %v648 = vpack.c.bf16 %v647, %v647
  %v649 = vld [vmem:[%s5] sm:$0xf]
  %v650 = vld [vmem:[%s5 + $0x4] sm:$0xf]
  %v651 = vld [vmem:[%s5 + $0x8] sm:$0xf]
  %v652 = vld [vmem:[%s5 + $0xc] sm:$0xf]
  %v653 = vld [vmem:[%s6] sm:$0x1]
  %v655 = vperm.slane %v653, 0
  %v661 = vunpack.c.l.b16 %v649
  %v662 = vunpack.c.l.b16 %v650
  %v663 = vunpack.c.l.b16 %v651
  %v664 = vunpack.c.l.b16 %v652
  %v665 = vpack.c.b16 %v662, %v661
  %v666 = vpack.c.b16 %v664, %v663
  %vm669 = vcmask 261120
  %v671 = vsel %vm669, %v648, 0
  %673 = vmatpush.bf16.msra.mxu0 0
  %674 = vmatpush.bf16.msra.mxu0 0
  %675 = vmatpush.bf16.msra.mxu0 0
  %676 = vmatpush.bf16.msra.mxu0 0
  %677 = vmatpush.bf16.msra.mxu0 0
  %678 = vmatpush.bf16.msra.mxu0 0
  %679 = vmatpush.bf16.msra.mxu0 %v666
  %680 = vmatpush.bf16.msra.mxu0 %v665
  %681 = vmatmul.bf16.gmra.mxu0 %v671
  %v682 = vpop.f32.mrf.mxu0
  %v683 = vadd.f32 %v655, %v682
  %v684 = vpop.f32.mrf.mxu0
  %685 = vdwg.mxu0
  %v686 = vmax.f32 %v683, 0.0
  %v687 = vld [vmem:[%s7] sm:$0xff]
  %v688 = vld [vmem:[%s7 + $0x8] sm:$0xff]
  %v689 = vld [vmem:[%s7 + $0x10] sm:$0xff]
  %v690 = vld [vmem:[%s7 + $0x18] sm:$0xff]
  %v691 = vld [vmem:[%s8] sm:$0x1]
  %v693 = vperm.slane %v691, 0
  %v696 = vsel %vm669, %v686, 0
  %698 = vmatpush.msra.mxu0 0.0
  %699 = vmatpush.msra.mxu0 0.0
  %700 = vmatpush.msra.mxu0 0.0
  %701 = vmatpush.msra.mxu0 0.0
  %702 = vmatpush.msra.mxu0 0.0
  %703 = vmatpush.msra.mxu0 0.0
  %704 = vmatpush.msra.mxu0 0.0
  %705 = vmatpush.msra.mxu0 0.0
  %706 = vmatpush.msra.mxu0 0.0
  %707 = vmatpush.msra.mxu0 0.0
  %708 = vmatpush.msra.mxu0 0.0
  %709 = vmatpush.msra.mxu0 0.0
  %710 = vmatpush.msra.mxu0 %v690
  %711 = vmatpush.msra.mxu0 %v689
  %712 = vmatpush.msra.mxu0 %v688
  %713 = vmatpush.msra.mxu0 %v687
  %714 = vmatmul.f32.gmra.mxu0 %v696
  %v715 = vpop.f32.mrf.mxu0
  %v716 = vadd.f32 %v693, %v715
  %717 = vdwg.mxu0
  %v718 = vld [vmem:[%s9] sm:$0x3]
  %v719 = vmul.f32 %v716, %v718
  %v720 = vlaneseq
  %v721 = vand.u32 %v720, 127
  %vm722 = vcmask 25600
  %v723 = vsel %vm722, %v719, -inf
  %724 = vmax.xlane.f32.xlu0 %v723
  %v725 = vpop.xlane.xlu0 %724
  %vm726 = vcmp.eq.f32.partialorder %v719, %v725
  %v727 = vsel %vm726, %v721, 4
  %v728 = vsel %vm722, %v727, 2147483647
  %v729 = vand.u32 %v728, 65535
  %v730 = vshra.s32 %v728, 16
  %v731 = vcvt.s32.f32 %v729
  %v732 = vcvt.s32.f32 %v730
  %733 = vmin.xlane.f32.xlu0 %v732
  %v734 = vpop.xlane.xlu0 %733
  %vm735 = vcmp.eq.f32.partialorder %v732, %v734
  %v736 = vsel %vm735, %v731, inf
  %737 = vmin.xlane.f32.xlu0 %v736
  %v738 = vpop.xlane.xlu0 %737
  %v739 = vcvt.f32.s32 %v738
  %v740 = vcvt.f32.s32 %v734
  %v741 = vshll.u32 %v740, 16
  %v742 = vadd.s32 %v741, %v739
  %vm743 = vcmask 1024
  %744 = vst.msk [vmem:[%s10] sm:$0x3] %vm743, %v742
  // Predicated region
  $region42: #{wrapper_net_forward.1} parent=0 // pred_check
    _
  $region43: #{wrapper_net_forward.1} parent=0 // pred_check_branch
    %746 = sbr.rel (0) target = $region45
  $region44: #{wrapper_net_forward.1} parent=0 // pred_region
    _
  $region45: #{wrapper_net_forward.1} parent=0 // pred_fallthru
    _
  // Predicated region
  $region46: #{wrapper_net_forward.1} parent=0 // pred_check
    _
  $region47: #{wrapper_net_forward.1} parent=0 // pred_check_branch
    %748 = sbr.rel (0) target = $region49
  $region48: #{wrapper_net_forward.1} parent=0 // pred_region
    _
  $region49: #{wrapper_net_forward.1} parent=0 // pred_fallthru
    _

</llo_original>
